<compile_context>
chip_gen: v5e
topology: v5e:2x2
jax: 0.10.0
libtpu: 0.0.40
codegen_flags: <defaults>
</compile_context>

<pallas_src>
import functools

import jax
import jax.numpy as jnp
from jax import lax
from jax.experimental import pallas as pl
from jax.experimental.pallas import tpu as pltpu


def mha_kernel(x_ref, wq_ref, bq_ref, wk_ref, bk_ref, wv_ref, bv_ref,
               wp_ref, bp_ref, o_ref, k_scr, v_scr, merged_scr,
               *, num_heads, emb_size, q_tile):
    e = emb_size
    h = num_heads
    d = e // h
    tq = q_tile
    # NOTE: the PyTorch module scales by sqrt(emb_size), NOT sqrt(head_dim).
    inv_scale = 1.0 / (e ** 0.5)

    qi = pl.program_id(1)

    # ---- K/V projection: once per batch element, straight into persistent
    # bf16 VMEM scratch.  The qi axis is "arbitrary", so qi == 0 runs first.
    @pl.when(qi == 0)
    def _():
        x_all = x_ref[...]                                            # (N, E) bf16
        k_scr[...] = (jnp.dot(x_all, wk_ref[...],
                              preferred_element_type=jnp.float32)
                      + bk_ref[...]).astype(jnp.bfloat16)
        v_scr[...] = (jnp.dot(x_all, wv_ref[...],
                              preferred_element_type=jnp.float32)
                      + bv_ref[...]).astype(jnp.bfloat16)

    # ---- Q projection for this query tile, sliced out of the full x block
    # (no duplicated x input).  Softmax scale folded into Q.
    row0 = pl.multiple_of(qi * tq, tq)
    x_q = x_ref[pl.ds(row0, tq), :]                                   # (tq, E) bf16
    q = jnp.dot(x_q, wq_ref[...], preferred_element_type=jnp.float32) + bq_ref[...]
    q = (q * inv_scale).astype(jnp.bfloat16)                          # (tq, E)

    # ---- Per-head attention on contiguous lane slices (relayout-free when
    # D % 128 == 0).
    # TODO(synk): for D < 128, a batched (H, tq, D) dot_general or padding D
    #             to 128 would raise MXU utilization.
    for hh in range(h):
        sl = slice(hh * d, (hh + 1) * d)
        q_h = q[:, sl]                                                # (tq, D)
        k_h = k_scr[:, sl]                                            # (N,  D)
        v_h = v_scr[:, sl]                                            # (N,  D)

        # energy: 'qd,kd->qk' (contract last dims; no explicit transpose).
        energy = lax.dot_general(q_h, k_h, (((1,), (1,)), ((), ())),
                                 preferred_element_type=jnp.float32)  # (tq, N)

        # Softmax in f32; divide replaced by an EUP reciprocal.
        m = jnp.max(energy, axis=-1, keepdims=True)
        p = jnp.exp(energy - m)
        l = jnp.sum(p, axis=-1, keepdims=True)
        att = (p * pl.reciprocal(l, approx=True)).astype(jnp.bfloat16)
        # TODO(synk): att_drop (nn.Dropout) is identity in eval mode; training
        #             dropout and the optional mask are not implemented.

        out_h = jnp.dot(att, v_h, preferred_element_type=jnp.float32)  # (tq, D)
        merged_scr[:, sl] = out_h.astype(jnp.bfloat16)

    # ---- Output projection from the merged bf16 slab (no concatenate).
    out = jnp.dot(merged_scr[...], wp_ref[...],
                  preferred_element_type=jnp.float32) + bp_ref[...]
    o_ref[...] = out.astype(o_ref.dtype)


def multi_head_attention(x, params, *, num_heads, q_tile=256,
                         vmem_limit_bytes=64 * 1024 * 1024):
    """x: (B, N, E) f32 (cast to bf16 for the kernel body).

    params: wq/wk/wv/wp (E, E) bf16, stored pre-transposed (E_in, E_out) so the
            kernel computes x @ W + b; bq/bk/bv/bp (1, E) f32.
    """
    B, N, E = x.shape
    assert E % num_heads == 0
    tq = min(q_tile, N)     # 256 suits v6e/v7x MXU; pass q_tile=128 on v5e.
    assert N % tq == 0
    n_q = N // tq

    out_dtype = x.dtype
    x_bf16 = x.astype(jnp.bfloat16)   # halves HBM->VMEM bytes for the big block

    kernel = functools.partial(mha_kernel, num_heads=num_heads, emb_size=E,
                               q_tile=tq)
    const = lambda b, qi: (0, 0)      # weights/biases: same block every step
    resident = pl.Buffered(1)         # grid-constant blocks: single-buffer

    return pl.pallas_call(
        kernel,
        out_shape=jax.ShapeDtypeStruct((B, N, E), out_dtype),
        grid_spec=pltpu.PrefetchScalarGridSpec(
            num_scalar_prefetch=0,
            grid=(B, n_q),
            in_specs=[
                # x, full sequence per batch element (kernel sees (N, E) bf16);
                # constant across qi, so single-buffered too.
                pl.BlockSpec((None, N, E), lambda b, qi: (b, 0, 0),
                             pipeline_mode=resident),
                pl.BlockSpec((E, E), const, pipeline_mode=resident),   # wq (bf16)
                pl.BlockSpec((1, E), const, pipeline_mode=resident),   # bq (f32)
                pl.BlockSpec((E, E), const, pipeline_mode=resident),   # wk (bf16)
                pl.BlockSpec((1, E), const, pipeline_mode=resident),   # bk (f32)
                pl.BlockSpec((E, E), const, pipeline_mode=resident),   # wv (bf16)
                pl.BlockSpec((1, E), const, pipeline_mode=resident),   # bv (f32)
                pl.BlockSpec((E, E), const, pipeline_mode=resident),   # wp (bf16)
                pl.BlockSpec((1, E), const, pipeline_mode=resident),   # bp (f32)
            ],
            out_specs=pl.BlockSpec((None, tq, E), lambda b, qi: (b, qi, 0)),
            scratch_shapes=[
                pltpu.VMEM((N, E), jnp.bfloat16),    # K (persists across qi)
                pltpu.VMEM((N, E), jnp.bfloat16),    # V (persists across qi)
                pltpu.VMEM((tq, E), jnp.bfloat16),   # merged head outputs
            ],
        ),
        compiler_params=pltpu.CompilerParams(
            # qi must be "arbitrary": K/V scratch is filled at qi == 0 and read
            # by the later query tiles; batch stays "parallel" for megacore.
            dimension_semantics=("parallel", "arbitrary"),
            # Re-derive per generation: ~48-56 MiB on v7x (64 MiB physical),
            # up to ~100 MiB on v5e/v6e.
            vmem_limit_bytes=vmem_limit_bytes,
        ),
    )(x_bf16,
      params["wq"], params["bq"], params["wk"], params["bk"],
      params["wv"], params["bv"], params["wp"], params["bp"])


def _reference(x, p, *, num_heads):
    """Pure-JAX f32 reference mirroring the PyTorch forward (eval, mask=None)."""
    B, N, E = x.shape
    H, D = num_heads, E // num_heads

    def lin(x, w, b):
        return x @ w + b[0]

    q = lin(x, p["wq"], p["bq"]).reshape(B, N, H, D).transpose(0, 2, 1, 3)
    k = lin(x, p["wk"], p["bk"]).reshape(B, N, H, D).transpose(0, 2, 1, 3)
    v = lin(x, p["wv"], p["bv"]).reshape(B, N, H, D).transpose(0, 2, 1, 3)
    energy = jnp.einsum('bhqd,bhkd->bhqk', q, k)
    att = jax.nn.softmax(energy / (E ** 0.5), axis=-1)
    out = jnp.einsum('bhqk,bhkd->bhqd', att, v)
    out = out.transpose(0, 2, 1, 3).reshape(B, N, E)
    return lin(out, p["wp"], p["bp"])


if __name__ == "__main__":
    B, N, E, H = 2, 8, 32, 4

    key = jax.random.PRNGKey(0)
    keys = jax.random.split(key, 9)

    # Deterministic nn.Linear-like init.  Weights stored as (E_in, E_out).
    bound = 1.0 / (E ** 0.5)

    def u(k, shape):
        return jax.random.uniform(k, shape, jnp.float32, -bound, bound)

    wq, bq = u(keys[0], (E, E)), u(keys[1], (1, E))
    wk, bk = u(keys[2], (E, E)), u(keys[3], (1, E))
    wv, bv = u(keys[4], (E, E)), u(keys[5], (1, E))
    wp, bp = u(keys[6], (E, E)), u(keys[7], (1, E))

    x = jax.random.normal(keys[8], (B, N, E), jnp.float32)

    # Kernel params: weights bf16 (MXU-friendly), biases f32.
    kernel_params = {
        "wq": wq.astype(jnp.bfloat16), "bq": bq,
        "wk": wk.astype(jnp.bfloat16), "bk": bk,
        "wv": wv.astype(jnp.bfloat16), "bv": bv,
        "wp": wp.astype(jnp.bfloat16), "bp": bp,
    }

    out = multi_head_attention(x, kernel_params, num_heads=H)
    out = jax.block_until_ready(out)

    # Reference uses the same bf16-rounded weights/input (f32 math) so the
    # comparison isolates kernel arithmetic from parameter quantization.
    r32 = lambda a: a.astype(jnp.bfloat16).astype(jnp.float32)
    ref_params = {"wq": r32(wq), "bq": bq, "wk": r32(wk), "bk": bk,
                  "wv": r32(wv), "bv": bv, "wp": r32(wp), "bp": bp}
    ref = _reference(r32(x), ref_params, num_heads=H)

    assert out.shape == (B, N, E)
    # Tolerance reflects bf16 MXU inputs (f32 accumulation) and the EUP approx
    # reciprocal vs. the pure-f32 reference.
    assert jnp.allclose(out, ref, atol=2e-2, rtol=2e-2), "mismatch vs. pure-JAX reference"

    print("KERNEL_OK")
</pallas_src>

<mosaic_0001>
module attributes {stable_mosaic.version = 11 : i64} {
  func.func @mha_kernel(%arg0: i32, %arg1: i32, %arg2: memref<1x8x32xbf16, #tpu.memory_space<vmem>>, %arg3: memref<32x32xbf16, #tpu.memory_space<vmem>>, %arg4: memref<1x32xf32, #tpu.memory_space<vmem>>, %arg5: memref<32x32xbf16, #tpu.memory_space<vmem>>, %arg6: memref<1x32xf32, #tpu.memory_space<vmem>>, %arg7: memref<32x32xbf16, #tpu.memory_space<vmem>>, %arg8: memref<1x32xf32, #tpu.memory_space<vmem>>, %arg9: memref<32x32xbf16, #tpu.memory_space<vmem>>, %arg10: memref<1x32xf32, #tpu.memory_space<vmem>>, %arg11: memref<1x8x32xf32, #tpu.memory_space<vmem>>, %arg12: memref<8x32xbf16, #tpu.memory_space<vmem>>, %arg13: memref<8x32xbf16, #tpu.memory_space<vmem>>, %arg14: memref<8x32xbf16, #tpu.memory_space<vmem>>) attributes {dimension_semantics = [#tpu.dimension_semantics<parallel>, #tpu.dimension_semantics<arbitrary>], iteration_bounds = array<i64: 2, 1>, scalar_prefetch = 0 : i64, scratch_operands = 3 : i64, tpu.core_type = #tpu.core_type<tc>, window_params = [{pipeline_mode = #tpu.pipeline_mode<synchronous>, transform_indices = @transform_0, window_bounds = array<i64: 1, 8, 32>}, {pipeline_mode = #tpu.pipeline_mode<synchronous>, transform_indices = @transform_1, window_bounds = array<i64: 32, 32>}, {pipeline_mode = #tpu.pipeline_mode<synchronous>, transform_indices = @transform_2, window_bounds = array<i64: 1, 32>}, {pipeline_mode = #tpu.pipeline_mode<synchronous>, transform_indices = @transform_3, window_bounds = array<i64: 32, 32>}, {pipeline_mode = #tpu.pipeline_mode<synchronous>, transform_indices = @transform_4, window_bounds = array<i64: 1, 32>}, {pipeline_mode = #tpu.pipeline_mode<synchronous>, transform_indices = @transform_5, window_bounds = array<i64: 32, 32>}, {pipeline_mode = #tpu.pipeline_mode<synchronous>, transform_indices = @transform_6, window_bounds = array<i64: 1, 32>}, {pipeline_mode = #tpu.pipeline_mode<synchronous>, transform_indices = @transform_7, window_bounds = array<i64: 32, 32>}, {pipeline_mode = #tpu.pipeline_mode<synchronous>, transform_indices = @transform_8, window_bounds = array<i64: 1, 32>}, {transform_indices = @transform_9, window_bounds = array<i64: 1, 8, 32>}]} {
    %c0_i32 = arith.constant 0 : i32
    %0 = arith.cmpi eq, %arg1, %c0_i32 : i32
    %1 = arith.extui %0 : i1 to i32
    %c0_i32_0 = arith.constant 0 : i32
    %2 = arith.cmpi ne, %1, %c0_i32_0 : i32
    scf.if %2 {
      %c0_54 = arith.constant 0 : index
      %c0_55 = arith.constant 0 : index
      %c0_56 = arith.constant 0 : index
      %97 = vector.load %arg2[%c0_54, %c0_55, %c0_56] : memref<1x8x32xbf16, #tpu.memory_space<vmem>>, vector<1x8x32xbf16>
      %98 = vector.shape_cast %97 : vector<1x8x32xbf16> to vector<8x32xbf16>
      %c0_57 = arith.constant 0 : index
      %c0_58 = arith.constant 0 : index
      %99 = vector.load %arg5[%c0_57, %c0_58] : memref<32x32xbf16, #tpu.memory_space<vmem>>, vector<32x32xbf16>
      %cst_59 = arith.constant dense<0.000000e+00> : vector<8x32xf32>
      %100 = tpu.matmul %98, %99, %cst_59 {dimension_numbers = #tpu.dot_dimension_numbers<[1], [0], [0], [1], [0, 0, 1, 1], [], []>} : vector<8x32xbf16>, vector<32x32xbf16>, vector<8x32xf32> -> vector<8x32xf32>
      %c0_60 = arith.constant 0 : index
      %c0_61 = arith.constant 0 : index
      %101 = vector.load %arg6[%c0_60, %c0_61] : memref<1x32xf32, #tpu.memory_space<vmem>>, vector<1x32xf32>
      %102 = vector.broadcast %101 : vector<1x32xf32> to vector<8x32xf32>
      %103 = arith.addf %100, %102 : vector<8x32xf32>
      %104 = arith.truncf %103 : vector<8x32xf32> to vector<8x32xbf16>
      %c0_62 = arith.constant 0 : index
      %c0_63 = arith.constant 0 : index
      %105 = vector.load %arg12[%c0_62, %c0_63] : memref<8x32xbf16, #tpu.memory_space<vmem>>, vector<8x32xbf16>
      tpu.vector_store %arg12[%c0_62, %c0_63], %104 {strides = array<i32>} : memref<8x32xbf16, #tpu.memory_space<vmem>>, vector<8x32xbf16>,
      %c0_64 = arith.constant 0 : index
      %c0_65 = arith.constant 0 : index
      %106 = vector.load %arg7[%c0_64, %c0_65] : memref<32x32xbf16, #tpu.memory_space<vmem>>, vector<32x32xbf16>
      %cst_66 = arith.constant dense<0.000000e+00> : vector<8x32xf32>
      %107 = tpu.matmul %98, %106, %cst_66 {dimension_numbers = #tpu.dot_dimension_numbers<[1], [0], [0], [1], [0, 0, 1, 1], [], []>} : vector<8x32xbf16>, vector<32x32xbf16>, vector<8x32xf32> -> vector<8x32xf32>
      %c0_67 = arith.constant 0 : index
      %c0_68 = arith.constant 0 : index
      %108 = vector.load %arg8[%c0_67, %c0_68] : memref<1x32xf32, #tpu.memory_space<vmem>>, vector<1x32xf32>
      %109 = vector.broadcast %108 : vector<1x32xf32> to vector<8x32xf32>
      %110 = arith.addf %107, %109 : vector<8x32xf32>
      %111 = arith.truncf %110 : vector<8x32xf32> to vector<8x32xbf16>
      %c0_69 = arith.constant 0 : index
      %c0_70 = arith.constant 0 : index
      %112 = vector.load %arg13[%c0_69, %c0_70] : memref<8x32xbf16, #tpu.memory_space<vmem>>, vector<8x32xbf16>
      tpu.vector_store %arg13[%c0_69, %c0_70], %111 {strides = array<i32>} : memref<8x32xbf16, #tpu.memory_space<vmem>>, vector<8x32xbf16>,
    } else {
    }
    %c8_i32 = arith.constant 8 : i32
    %3 = arith.muli %arg1, %c8_i32 : i32
    %4 = tpu.assume_multiple %3, 8 : i32
    %c0 = arith.constant 0 : index
    %5 = arith.index_cast %4 : i32 to index
    %c0_1 = arith.constant 0 : index
    %6 = vector.load %arg2[%c0, %5, %c0_1] : memref<1x8x32xbf16, #tpu.memory_space<vmem>>, vector<1x8x32xbf16>
    %7 = vector.shape_cast %6 : vector<1x8x32xbf16> to vector<8x32xbf16>
    %c0_2 = arith.constant 0 : index
    %c0_3 = arith.constant 0 : index
    %8 = vector.load %arg3[%c0_2, %c0_3] : memref<32x32xbf16, #tpu.memory_space<vmem>>, vector<32x32xbf16>
    %cst = arith.constant dense<0.000000e+00> : vector<8x32xf32>
    %9 = tpu.matmul %7, %8, %cst {dimension_numbers = #tpu.dot_dimension_numbers<[1], [0], [0], [1], [0, 0, 1, 1], [], []>} : vector<8x32xbf16>, vector<32x32xbf16>, vector<8x32xf32> -> vector<8x32xf32>
    %c0_4 = arith.constant 0 : index
    %c0_5 = arith.constant 0 : index
    %10 = vector.load %arg4[%c0_4, %c0_5] : memref<1x32xf32, #tpu.memory_space<vmem>>, vector<1x32xf32>
    %11 = vector.broadcast %10 : vector<1x32xf32> to vector<8x32xf32>
    %12 = arith.addf %9, %11 : vector<8x32xf32>
    %cst_6 = arith.constant 0.176776692 : f32
    %13 = vector.broadcast %cst_6 : f32 to vector<8x32xf32>
    %14 = arith.mulf %12, %13 : vector<8x32xf32>
    %15 = arith.truncf %14 : vector<8x32xf32> to vector<8x32xbf16>
    %16 = vector.extract_strided_slice %15 {offsets = [0, 0], sizes = [8, 8], strides = [1, 1]} : vector<8x32xbf16> to vector<8x8xbf16>
    %c0_7 = arith.constant 0 : index
    %c0_8 = arith.constant 0 : index
    %17 = vector.load %arg12[%c0_7, %c0_8] : memref<8x32xbf16, #tpu.memory_space<vmem>>, vector<8x8xbf16>
    %c0_9 = arith.constant 0 : index
    %c0_10 = arith.constant 0 : index
    %18 = vector.load %arg13[%c0_9, %c0_10] : memref<8x32xbf16, #tpu.memory_space<vmem>>, vector<8x8xbf16>
    %cst_11 = arith.constant dense<0.000000e+00> : vector<8x8xf32>
    %19 = tpu.matmul %16, %17, %cst_11 {dimension_numbers = #tpu.dot_dimension_numbers<[1], [1], [0], [0], [0, 0, 1, 0], [], []>} : vector<8x8xbf16>, vector<8x8xbf16>, vector<8x8xf32> -> vector<8x8xf32>
    %cst_12 = arith.constant dense<0xFF800000> : vector<8xf32>
    %20 = vector.multi_reduction <maximumf>, %19, %cst_12 [1] : vector<8x8xf32> to vector<8xf32>
    %21 = vector.shape_cast %20 : vector<8xf32> to vector<8x1xf32>
    %22 = vector.broadcast %21 : vector<8x1xf32> to vector<8x8xf32>
    %23 = arith.subf %19, %22 : vector<8x8xf32>
    %24 = math.exp %23 : vector<8x8xf32>
    %cst_13 = arith.constant dense<0.000000e+00> : vector<8xf32>
    %25 = vector.multi_reduction <add>, %24, %cst_13 [1] : vector<8x8xf32> to vector<8xf32>
    %26 = vector.shape_cast %25 : vector<8xf32> to vector<8x1xf32>
    %27 = tpu.reciprocal %26 {approx = true} : vector<8x1xf32> -> vector<8x1xf32>
    %28 = vector.broadcast %27 : vector<8x1xf32> to vector<8x8xf32>
    %29 = arith.mulf %24, %28 : vector<8x8xf32>
    %30 = arith.truncf %29 : vector<8x8xf32> to vector<8x8xbf16>
    %cst_14 = arith.constant dense<0.000000e+00> : vector<8x8xf32>
    %31 = tpu.matmul %30, %18, %cst_14 {dimension_numbers = #tpu.dot_dimension_numbers<[1], [0], [0], [1], [0, 0, 1, 1], [], []>} : vector<8x8xbf16>, vector<8x8xbf16>, vector<8x8xf32> -> vector<8x8xf32>
    %32 = arith.truncf %31 : vector<8x8xf32> to vector<8x8xbf16>
    %c0_15 = arith.constant 0 : index
    %c0_16 = arith.constant 0 : index
    %33 = vector.load %arg14[%c0_15, %c0_16] : memref<8x32xbf16, #tpu.memory_space<vmem>>, vector<8x8xbf16>
    tpu.vector_store %arg14[%c0_15, %c0_16], %32 {strides = array<i32>} : memref<8x32xbf16, #tpu.memory_space<vmem>>, vector<8x8xbf16>,
    %34 = vector.extract_strided_slice %15 {offsets = [0, 8], sizes = [8, 8], strides = [1, 1]} : vector<8x32xbf16> to vector<8x8xbf16>
    %c0_17 = arith.constant 0 : index
    %c8 = arith.constant 8 : index
    %35 = vector.load %arg12[%c0_17, %c8] : memref<8x32xbf16, #tpu.memory_space<vmem>>, vector<8x8xbf16>
    %c0_18 = arith.constant 0 : index
    %c8_19 = arith.constant 8 : index
    %36 = vector.load %arg13[%c0_18, %c8_19] : memref<8x32xbf16, #tpu.memory_space<vmem>>, vector<8x8xbf16>
    %cst_20 = arith.constant dense<0.000000e+00> : vector<8x8xf32>
    %37 = tpu.matmul %34, %35, %cst_20 {dimension_numbers = #tpu.dot_dimension_numbers<[1], [1], [0], [0], [0, 0, 1, 0], [], []>} : vector<8x8xbf16>, vector<8x8xbf16>, vector<8x8xf32> -> vector<8x8xf32>
    %cst_21 = arith.constant dense<0xFF800000> : vector<8xf32>
    %38 = vector.multi_reduction <maximumf>, %37, %cst_21 [1] : vector<8x8xf32> to vector<8xf32>
    %39 = vector.shape_cast %38 : vector<8xf32> to vector<8x1xf32>
    %40 = vector.broadcast %39 : vector<8x1xf32> to vector<8x8xf32>
    %41 = arith.subf %37, %40 : vector<8x8xf32>
    %42 = math.exp %41 : vector<8x8xf32>
    %cst_22 = arith.constant dense<0.000000e+00> : vector<8xf32>
    %43 = vector.multi_reduction <add>, %42, %cst_22 [1] : vector<8x8xf32> to vector<8xf32>
    %44 = vector.shape_cast %43 : vector<8xf32> to vector<8x1xf32>
    %45 = tpu.reciprocal %44 {approx = true} : vector<8x1xf32> -> vector<8x1xf32>
    %46 = vector.broadcast %45 : vector<8x1xf32> to vector<8x8xf32>
    %47 = arith.mulf %42, %46 : vector<8x8xf32>
    %48 = arith.truncf %47 : vector<8x8xf32> to vector<8x8xbf16>
    %cst_23 = arith.constant dense<0.000000e+00> : vector<8x8xf32>
    %49 = tpu.matmul %48, %36, %cst_23 {dimension_numbers = #tpu.dot_dimension_numbers<[1], [0], [0], [1], [0, 0, 1, 1], [], []>} : vector<8x8xbf16>, vector<8x8xbf16>, vector<8x8xf32> -> vector<8x8xf32>
    %50 = arith.truncf %49 : vector<8x8xf32> to vector<8x8xbf16>
    %c0_24 = arith.constant 0 : index
    %c8_25 = arith.constant 8 : index
    %51 = vector.load %arg14[%c0_24, %c8_25] : memref<8x32xbf16, #tpu.memory_space<vmem>>, vector<8x8xbf16>
    tpu.vector_store %arg14[%c0_24, %c8_25], %50 {strides = array<i32>} : memref<8x32xbf16, #tpu.memory_space<vmem>>, vector<8x8xbf16>,
    %52 = vector.extract_strided_slice %15 {offsets = [0, 16], sizes = [8, 8], strides = [1, 1]} : vector<8x32xbf16> to vector<8x8xbf16>
    %c0_26 = arith.constant 0 : index
    %c16 = arith.constant 16 : index
    %53 = vector.load %arg12[%c0_26, %c16] : memref<8x32xbf16, #tpu.memory_space<vmem>>, vector<8x8xbf16>
    %c0_27 = arith.constant 0 : index
    %c16_28 = arith.constant 16 : index
    %54 = vector.load %arg13[%c0_27, %c16_28] : memref<8x32xbf16, #tpu.memory_space<vmem>>, vector<8x8xbf16>
    %cst_29 = arith.constant dense<0.000000e+00> : vector<8x8xf32>
    %55 = tpu.matmul %52, %53, %cst_29 {dimension_numbers = #tpu.dot_dimension_numbers<[1], [1], [0], [0], [0, 0, 1, 0], [], []>} : vector<8x8xbf16>, vector<8x8xbf16>, vector<8x8xf32> -> vector<8x8xf32>
    %cst_30 = arith.constant dense<0xFF800000> : vector<8xf32>
    %56 = vector.multi_reduction <maximumf>, %55, %cst_30 [1] : vector<8x8xf32> to vector<8xf32>
    %57 = vector.shape_cast %56 : vector<8xf32> to vector<8x1xf32>
    %58 = vector.broadcast %57 : vector<8x1xf32> to vector<8x8xf32>
    %59 = arith.subf %55, %58 : vector<8x8xf32>
    %60 = math.exp %59 : vector<8x8xf32>
    %cst_31 = arith.constant dense<0.000000e+00> : vector<8xf32>
    %61 = vector.multi_reduction <add>, %60, %cst_31 [1] : vector<8x8xf32> to vector<8xf32>
    %62 = vector.shape_cast %61 : vector<8xf32> to vector<8x1xf32>
    %63 = tpu.reciprocal %62 {approx = true} : vector<8x1xf32> -> vector<8x1xf32>
    %64 = vector.broadcast %63 : vector<8x1xf32> to vector<8x8xf32>
    %65 = arith.mulf %60, %64 : vector<8x8xf32>
    %66 = arith.truncf %65 : vector<8x8xf32> to vector<8x8xbf16>
    %cst_32 = arith.constant dense<0.000000e+00> : vector<8x8xf32>
    %67 = tpu.matmul %66, %54, %cst_32 {dimension_numbers = #tpu.dot_dimension_numbers<[1], [0], [0], [1], [0, 0, 1, 1], [], []>} : vector<8x8xbf16>, vector<8x8xbf16>, vector<8x8xf32> -> vector<8x8xf32>
    %68 = arith.truncf %67 : vector<8x8xf32> to vector<8x8xbf16>
    %c0_33 = arith.constant 0 : index
    %c16_34 = arith.constant 16 : index
    %69 = vector.load %arg14[%c0_33, %c16_34] : memref<8x32xbf16, #tpu.memory_space<vmem>>, vector<8x8xbf16>
    tpu.vector_store %arg14[%c0_33, %c16_34], %68 {strides = array<i32>} : memref<8x32xbf16, #tpu.memory_space<vmem>>, vector<8x8xbf16>,
    %70 = vector.extract_strided_slice %15 {offsets = [0, 24], sizes = [8, 8], strides = [1, 1]} : vector<8x32xbf16> to vector<8x8xbf16>
    %c0_35 = arith.constant 0 : index
    %c24 = arith.constant 24 : index
    %71 = vector.load %arg12[%c0_35, %c24] : memref<8x32xbf16, #tpu.memory_space<vmem>>, vector<8x8xbf16>
    %c0_36 = arith.constant 0 : index
    %c24_37 = arith.constant 24 : index
    %72 = vector.load %arg13[%c0_36, %c24_37] : memref<8x32xbf16, #tpu.memory_space<vmem>>, vector<8x8xbf16>
    %cst_38 = arith.constant dense<0.000000e+00> : vector<8x8xf32>
    %73 = tpu.matmul %70, %71, %cst_38 {dimension_numbers = #tpu.dot_dimension_numbers<[1], [1], [0], [0], [0, 0, 1, 0], [], []>} : vector<8x8xbf16>, vector<8x8xbf16>, vector<8x8xf32> -> vector<8x8xf32>
    %cst_39 = arith.constant dense<0xFF800000> : vector<8xf32>
    %74 = vector.multi_reduction <maximumf>, %73, %cst_39 [1] : vector<8x8xf32> to vector<8xf32>
    %75 = vector.shape_cast %74 : vector<8xf32> to vector<8x1xf32>
    %76 = vector.broadcast %75 : vector<8x1xf32> to vector<8x8xf32>
    %77 = arith.subf %73, %76 : vector<8x8xf32>
    %78 = math.exp %77 : vector<8x8xf32>
    %cst_40 = arith.constant dense<0.000000e+00> : vector<8xf32>
    %79 = vector.multi_reduction <add>, %78, %cst_40 [1] : vector<8x8xf32> to vector<8xf32>
    %80 = vector.shape_cast %79 : vector<8xf32> to vector<8x1xf32>
    %81 = tpu.reciprocal %80 {approx = true} : vector<8x1xf32> -> vector<8x1xf32>
    %82 = vector.broadcast %81 : vector<8x1xf32> to vector<8x8xf32>
    %83 = arith.mulf %78, %82 : vector<8x8xf32>
    %84 = arith.truncf %83 : vector<8x8xf32> to vector<8x8xbf16>
    %cst_41 = arith.constant dense<0.000000e+00> : vector<8x8xf32>
    %85 = tpu.matmul %84, %72, %cst_41 {dimension_numbers = #tpu.dot_dimension_numbers<[1], [0], [0], [1], [0, 0, 1, 1], [], []>} : vector<8x8xbf16>, vector<8x8xbf16>, vector<8x8xf32> -> vector<8x8xf32>
    %86 = arith.truncf %85 : vector<8x8xf32> to vector<8x8xbf16>
    %c0_42 = arith.constant 0 : index
    %c24_43 = arith.constant 24 : index
    %87 = vector.load %arg14[%c0_42, %c24_43] : memref<8x32xbf16, #tpu.memory_space<vmem>>, vector<8x8xbf16>
    tpu.vector_store %arg14[%c0_42, %c24_43], %86 {strides = array<i32>} : memref<8x32xbf16, #tpu.memory_space<vmem>>, vector<8x8xbf16>,
    %c0_44 = arith.constant 0 : index
    %c0_45 = arith.constant 0 : index
    %88 = vector.load %arg14[%c0_44, %c0_45] : memref<8x32xbf16, #tpu.memory_space<vmem>>, vector<8x32xbf16>
    %c0_46 = arith.constant 0 : index
    %c0_47 = arith.constant 0 : index
    %89 = vector.load %arg9[%c0_46, %c0_47] : memref<32x32xbf16, #tpu.memory_space<vmem>>, vector<32x32xbf16>
    %cst_48 = arith.constant dense<0.000000e+00> : vector<8x32xf32>
    %90 = tpu.matmul %88, %89, %cst_48 {dimension_numbers = #tpu.dot_dimension_numbers<[1], [0], [0], [1], [0, 0, 1, 1], [], []>} : vector<8x32xbf16>, vector<32x32xbf16>, vector<8x32xf32> -> vector<8x32xf32>
    %c0_49 = arith.constant 0 : index
    %c0_50 = arith.constant 0 : index
    %91 = vector.load %arg10[%c0_49, %c0_50] : memref<1x32xf32, #tpu.memory_space<vmem>>, vector<1x32xf32>
    %92 = vector.broadcast %91 : vector<1x32xf32> to vector<8x32xf32>
    %93 = arith.addf %90, %92 : vector<8x32xf32>
    %c0_51 = arith.constant 0 : index
    %c0_52 = arith.constant 0 : index
    %c0_53 = arith.constant 0 : index
    %94 = vector.load %arg11[%c0_51, %c0_52, %c0_53] : memref<1x8x32xf32, #tpu.memory_space<vmem>>, vector<1x8x32xf32>
    %95 = vector.shape_cast %94 : vector<1x8x32xf32> to vector<8x32xf32>
    %96 = vector.shape_cast %93 : vector<8x32xf32> to vector<1x8x32xf32>
    tpu.vector_store %arg11[%c0_51, %c0_52, %c0_53], %96 {strides = array<i32>} : memref<1x8x32xf32, #tpu.memory_space<vmem>>, vector<1x8x32xf32>,
    return
  }
  func.func @transform_0(%arg0: i32, %arg1: i32) -> (i32, i32, i32) {
    %c0_i32 = arith.constant 0 : i32
    %c0_i32_0 = arith.constant 0 : i32
    %c0_i32_1 = arith.constant 0 : i32
    return %arg0, %c0_i32, %c0_i32_0 : i32, i32, i32
  }
  func.func @transform_1(%arg0: i32, %arg1: i32) -> (i32, i32) {
    %c0_i32 = arith.constant 0 : i32
    %c0_i32_0 = arith.constant 0 : i32
    %c0_i32_1 = arith.constant 0 : i32
    return %c0_i32, %c0_i32_0 : i32, i32
  }
  func.func @transform_2(%arg0: i32, %arg1: i32) -> (i32, i32) {
    %c0_i32 = arith.constant 0 : i32
    %c0_i32_0 = arith.constant 0 : i32
    %c0_i32_1 = arith.constant 0 : i32
    return %c0_i32, %c0_i32_0 : i32, i32
  }
  func.func @transform_3(%arg0: i32, %arg1: i32) -> (i32, i32) {
    %c0_i32 = arith.constant 0 : i32
    %c0_i32_0 = arith.constant 0 : i32
    %c0_i32_1 = arith.constant 0 : i32
    return %c0_i32, %c0_i32_0 : i32, i32
  }
  func.func @transform_4(%arg0: i32, %arg1: i32) -> (i32, i32) {
    %c0_i32 = arith.constant 0 : i32
    %c0_i32_0 = arith.constant 0 : i32
    %c0_i32_1 = arith.constant 0 : i32
    return %c0_i32, %c0_i32_0 : i32, i32
  }
  func.func @transform_5(%arg0: i32, %arg1: i32) -> (i32, i32) {
    %c0_i32 = arith.constant 0 : i32
    %c0_i32_0 = arith.constant 0 : i32
    %c0_i32_1 = arith.constant 0 : i32
    return %c0_i32, %c0_i32_0 : i32, i32
  }
  func.func @transform_6(%arg0: i32, %arg1: i32) -> (i32, i32) {
    %c0_i32 = arith.constant 0 : i32
    %c0_i32_0 = arith.constant 0 : i32
    %c0_i32_1 = arith.constant 0 : i32
    return %c0_i32, %c0_i32_0 : i32, i32
  }
  func.func @transform_7(%arg0: i32, %arg1: i32) -> (i32, i32) {
    %c0_i32 = arith.constant 0 : i32
    %c0_i32_0 = arith.constant 0 : i32
    %c0_i32_1 = arith.constant 0 : i32
    return %c0_i32, %c0_i32_0 : i32, i32
  }
  func.func @transform_8(%arg0: i32, %arg1: i32) -> (i32, i32) {
    %c0_i32 = arith.constant 0 : i32
    %c0_i32_0 = arith.constant 0 : i32
    %c0_i32_1 = arith.constant 0 : i32
    return %c0_i32, %c0_i32_0 : i32, i32
  }
  func.func @transform_9(%arg0: i32, %arg1: i32) -> (i32, i32, i32) {
    %c0_i32 = arith.constant 0 : i32
    %c0_i32_0 = arith.constant 0 : i32
    return %arg0, %arg1, %c0_i32 : i32, i32, i32
  }
}

</mosaic_0001>

<llo_original>
// kernel: tpu_custom_call.1
$region0: #{tpu_custom_call.1}
  #allocation0 [shape = 'u32[]', space=smem, size = 0x4, offset = 0x4, fixed_abs, tag = 'smem constant byte address 0x4 - core index']
  #allocation1 [shape = 'u32[72,128]{1,0:T(1,128)}', space=vmem, size = 0x9000, scoped, tag = 'internal scratch']
  #allocation2 [shape = 'bf16[8,32]{1,0:T(8,128)(2,1)}', space=vmem, size = 0x800, scoped, tag = 'scratch operand']
  #allocation3 [shape = 'bf16[8,32]{1,0:T(8,128)(2,1)}', space=vmem, size = 0x800, scoped, tag = 'scratch operand']
  #allocation4 [shape = 'bf16[8,32]{1,0:T(8,128)(2,1)}', space=vmem, size = 0x800, scoped, tag = 'scratch operand']
  %s0 = inlined_call_operand.hbm [shape: bf16[2,8,32], index: 0, kind: input, shape index: {}]
  %s1 = inlined_call_operand.hbm [shape: bf16[32,32], index: 1, kind: input, shape index: {}]
  %s2 = inlined_call_operand.vmem [shape: f32[1,32], index: 2, kind: input, shape index: {}]
  %s3 = inlined_call_operand.hbm [shape: bf16[32,32], index: 3, kind: input, shape index: {}]
  %s4 = inlined_call_operand.vmem [shape: f32[1,32], index: 4, kind: input, shape index: {}]
  %s5 = inlined_call_operand.hbm [shape: bf16[32,32], index: 5, kind: input, shape index: {}]
  %s6 = inlined_call_operand.vmem [shape: f32[1,32], index: 6, kind: input, shape index: {}]
  %s7 = inlined_call_operand.hbm [shape: bf16[32,32], index: 7, kind: input, shape index: {}]
  %s8 = inlined_call_operand.vmem [shape: f32[1,32], index: 8, kind: input, shape index: {}]
  %s9 = inlined_call_operand.hbm [shape: f32[2,8,32], index: 9, kind: output, shape index: {}]
  %s10 = sld [smem:[#allocation0]]
  $region93: #{tpu_custom_call.1} parent=0
    _
  %s12 = ssub.s32 1, %s10
  %s13 = scalar_select 0, %s12, %s10
  $region1: #{tpu_custom_call.1} parent=0
    #allocation5 [shape = 'u8[2048]{0}', space=vmem, size = 0x800, scoped, tag = 'input window, operand 0, single buffered']
    #allocation6 [shape = 's32[2]{0}', space=sflag, size = 0x8, scoped, tag = 'scoped memory for tpu_custom_call.1']
    #allocation7 [shape = 's32[2]{0}', space=sflag, size = 0x8, scoped, tag = 'scoped memory for tpu_custom_call.1']
    #allocation8 [shape = 'u8[8192]{0}', space=vmem, size = 0x2000, scoped, tag = 'input window, operand 1, single buffered']
    #allocation9 [shape = 's32[1]{0}', space=sflag, size = 0x4, scoped, tag = 'scoped memory for tpu_custom_call.1']
    #allocation10 [shape = 'u8[8192]{0}', space=vmem, size = 0x2000, scoped, tag = 'input window, operand 3, single buffered']
    #allocation11 [shape = 'u8[8192]{0}', space=vmem, size = 0x2000, scoped, tag = 'input window, operand 5, single buffered']
    #allocation12 [shape = 's32[1]{0}', space=sflag, size = 0x4, scoped, tag = 'scoped memory for tpu_custom_call.1']
    #allocation13 [shape = 'u8[8192]{0}', space=vmem, size = 0x2000, scoped, tag = 'input window, operand 7, single buffered']
    #allocation14 [shape = 'u8[8192]{0}', space=vmem, size = 0x2000, scoped, tag = 'output window, operand 0']
    %14 = vsyncpa [#allocation6], 0
    %15 = vsyncpa [#allocation9], 0
    %16 = vsyncpa [#allocation12], 0
    %17 = vsyncpa [#allocation7], 0
    %s18 = scalar_lea.sflag [#allocation7], 1
    %19 = vsyncpa %s18, 0
    loop: start=0, step=1, limit=4
    $region2: #{tpu_custom_call.1} parent=1 // loop_pre_header
      _
    $region3: #{tpu_custom_call.1} parent=1 // loop_header
      %s21 = sphi 0, %s25
      %p22 = scmp.ge.s32.totalorder %s21, 4
      %s28 = sphi 0, %s40
      %s29 = sphi 0, %s36
      %s30 = sphi 0, %s28
      %s31 = sphi 0, %s29
      %s32 = sphi 0, %s30
      %s33 = sphi 0, %s31
      %s43 = sphi 0, %s45
      %s46 = sphi 0, %s43
      %s47 = sphi 0, %s46
      %s63 = sphi 0, %s47
      %s67 = sphi 0, %s67
      %s69 = sphi 0, %s67
      %s70 = sphi 0, %s69
      %s84 = sphi 0, %s70
      %s88 = sphi 0, %s88
      %s90 = sphi 0, %s88
      %s91 = sphi 0, %s90
      %s105 = sphi 0, %s91
      %s109 = sphi 0, %s109
      %s111 = sphi 0, %s109
      %s112 = sphi 0, %s111
      %s126 = sphi 0, %s112
      %s130 = sphi 0, %s130
      %s132 = sphi 0, %s130
      %s133 = sphi 0, %s132
      %s147 = sphi 0, %s133
      %s151 = sphi 0, %s151
      %s153 = sphi 0, %s151
      %s154 = sphi 0, %s153
      %s168 = sphi 0, %s154
      %s172 = sphi 0, %s172
      %s174 = sphi 0, %s172
      %s175 = sphi 0, %s174
      %s189 = sphi 0, %s175
      %s193 = sphi 0, %s193
      %s195 = sphi 0, %s193
      %s196 = sphi 0, %s195
      %s210 = sphi 0, %s196
      %s214 = sphi 0, %s214
      %s216 = sphi 0, %s214
      %s217 = sphi 0, %s216
      %s231 = sphi 0, %s217
      %s239 = sphi 0, %s241
      %s242 = sphi 0, %s239
      %s243 = sphi 0, %s242
      %s259 = sphi 0, %s243
    $region4: #{tpu_custom_call.1} parent=1 // loop_header_branch
      %24 = sbr.rel (%p22) target = $region8
    $region5: #{tpu_custom_call.1} parent=1 // loop_body
      %s26 = ssub.s32 %s21, 1
      %s27 = ssub.s32 %s21, 2
      %s34 = sadd.s32 1, %s29
      %p35 = scmp.ge.s32.totalorder %s34, 1
      %s36 = scalar_select %p35, 0, %s34
      %s37 = sadd.s32 1, %s28
      %s38 = scalar_select %p35, %s37, %s28
      %p39 = scmp.ge.s32.totalorder %s38, 2
      %s40 = scalar_select %p39, 0, %s38
      %s41 = ssub.s32 %s28, %s40
      %p42 = scmp.eq.s32.totalorder %s41, 0
      %s44 = sadd.s32 %s43, 1
      %s45 = scalar_select %p42, %s43, %s44
      %p48 = pneg %p42
      %p49 = scmp.eq.s32.totalorder %s21, 1
      %p50 = por %p48, %p49
      %p51 = scmp.ne.s32.totalorder %s43, %s46
      %p52 = scmp.eq.s32.totalorder %s21, 0
      %p53 = por %p51, %p52
      %p54 = scmp.ne.s32.totalorder %s43, %s46
      %p55 = scmp.eq.s32.totalorder %s26, 1
      %p56 = por %p54, %p55
      %p57 = scmp.ne.s32.totalorder %s46, %s47
      %p58 = scmp.eq.s32.totalorder %s26, 0
      %p59 = por %p57, %p58
      %p60 = scmp.ne.s32.totalorder %s46, %s47
      %p61 = scmp.eq.s32.totalorder %s27, 1
      %p62 = por %p60, %p61
      %p64 = scmp.ne.s32.totalorder %s47, %s63
      %p65 = scmp.eq.s32.totalorder %s27, 0
      %p66 = por %p64, %p65
      %s68 = sadd.s32 %s67, 1
      %p71 = scmp.eq.s32.totalorder %s21, 1
      %p72 = scmp.ne.s32.totalorder %s67, %s69
      %p73 = scmp.eq.s32.totalorder %s21, 0
      %p74 = por %p72, %p73
      %p75 = scmp.ne.s32.totalorder %s67, %s69
      %p76 = scmp.eq.s32.totalorder %s26, 1
      %p77 = por %p75, %p76
      %p78 = scmp.ne.s32.totalorder %s69, %s70
      %p79 = scmp.eq.s32.totalorder %s26, 0
      %p80 = por %p78, %p79
      %p81 = scmp.ne.s32.totalorder %s69, %s70
      %p82 = scmp.eq.s32.totalorder %s27, 1
      %p83 = por %p81, %p82
      %p85 = scmp.ne.s32.totalorder %s70, %s84
      %p86 = scmp.eq.s32.totalorder %s27, 0
      %p87 = por %p85, %p86
      %s89 = sadd.s32 %s88, 1
      %p92 = scmp.eq.s32.totalorder %s21, 1
      %p93 = scmp.ne.s32.totalorder %s88, %s90
      %p94 = scmp.eq.s32.totalorder %s21, 0
      %p95 = por %p93, %p94
      %p96 = scmp.ne.s32.totalorder %s88, %s90
      %p97 = scmp.eq.s32.totalorder %s26, 1
      %p98 = por %p96, %p97
      %p99 = scmp.ne.s32.totalorder %s90, %s91
      %p100 = scmp.eq.s32.totalorder %s26, 0
      %p101 = por %p99, %p100
      %p102 = scmp.ne.s32.totalorder %s90, %s91
      %p103 = scmp.eq.s32.totalorder %s27, 1
      %p104 = por %p102, %p103
      %p106 = scmp.ne.s32.totalorder %s91, %s105
      %p107 = scmp.eq.s32.totalorder %s27, 0
      %p108 = por %p106, %p107
      %s110 = sadd.s32 %s109, 1
      %p113 = scmp.eq.s32.totalorder %s21, 1
      %p114 = scmp.ne.s32.totalorder %s109, %s111
      %p115 = scmp.eq.s32.totalorder %s21, 0
      %p116 = por %p114, %p115
      %p117 = scmp.ne.s32.totalorder %s109, %s111
      %p118 = scmp.eq.s32.totalorder %s26, 1
      %p119 = por %p117, %p118
      %p120 = scmp.ne.s32.totalorder %s111, %s112
      %p121 = scmp.eq.s32.totalorder %s26, 0
      %p122 = por %p120, %p121
      %p123 = scmp.ne.s32.totalorder %s111, %s112
      %p124 = scmp.eq.s32.totalorder %s27, 1
      %p125 = por %p123, %p124
      %p127 = scmp.ne.s32.totalorder %s112, %s126
      %p128 = scmp.eq.s32.totalorder %s27, 0
      %p129 = por %p127, %p128
      %s131 = sadd.s32 %s130, 1
      %p134 = scmp.eq.s32.totalorder %s21, 1
      %p135 = scmp.ne.s32.totalorder %s130, %s132
      %p136 = scmp.eq.s32.totalorder %s21, 0
      %p137 = por %p135, %p136
      %p138 = scmp.ne.s32.totalorder %s130, %s132
      %p139 = scmp.eq.s32.totalorder %s26, 1
      %p140 = por %p138, %p139
      %p141 = scmp.ne.s32.totalorder %s132, %s133
      %p142 = scmp.eq.s32.totalorder %s26, 0
      %p143 = por %p141, %p142
      %p144 = scmp.ne.s32.totalorder %s132, %s133
      %p145 = scmp.eq.s32.totalorder %s27, 1
      %p146 = por %p144, %p145
      %p148 = scmp.ne.s32.totalorder %s133, %s147
      %p149 = scmp.eq.s32.totalorder %s27, 0
      %p150 = por %p148, %p149
      %s152 = sadd.s32 %s151, 1
      %p155 = scmp.eq.s32.totalorder %s21, 1
      %p156 = scmp.ne.s32.totalorder %s151, %s153
      %p157 = scmp.eq.s32.totalorder %s21, 0
      %p158 = por %p156, %p157
      %p159 = scmp.ne.s32.totalorder %s151, %s153
      %p160 = scmp.eq.s32.totalorder %s26, 1
      %p161 = por %p159, %p160
      %p162 = scmp.ne.s32.totalorder %s153, %s154
      %p163 = scmp.eq.s32.totalorder %s26, 0
      %p164 = por %p162, %p163
      %p165 = scmp.ne.s32.totalorder %s153, %s154
      %p166 = scmp.eq.s32.totalorder %s27, 1
      %p167 = por %p165, %p166
      %p169 = scmp.ne.s32.totalorder %s154, %s168
      %p170 = scmp.eq.s32.totalorder %s27, 0
      %p171 = por %p169, %p170
      %s173 = sadd.s32 %s172, 1
      %p176 = scmp.eq.s32.totalorder %s21, 1
      %p177 = scmp.ne.s32.totalorder %s172, %s174
      %p178 = scmp.eq.s32.totalorder %s21, 0
      %p179 = por %p177, %p178
      %p180 = scmp.ne.s32.totalorder %s172, %s174
      %p181 = scmp.eq.s32.totalorder %s26, 1
      %p182 = por %p180, %p181
      %p183 = scmp.ne.s32.totalorder %s174, %s175
      %p184 = scmp.eq.s32.totalorder %s26, 0
      %p185 = por %p183, %p184
      %p186 = scmp.ne.s32.totalorder %s174, %s175
      %p187 = scmp.eq.s32.totalorder %s27, 1
      %p188 = por %p186, %p187
      %p190 = scmp.ne.s32.totalorder %s175, %s189
      %p191 = scmp.eq.s32.totalorder %s27, 0
      %p192 = por %p190, %p191
      %s194 = sadd.s32 %s193, 1
      %p197 = scmp.eq.s32.totalorder %s21, 1
      %p198 = scmp.ne.s32.totalorder %s193, %s195
      %p199 = scmp.eq.s32.totalorder %s21, 0
      %p200 = por %p198, %p199
      %p201 = scmp.ne.s32.totalorder %s193, %s195
      %p202 = scmp.eq.s32.totalorder %s26, 1
      %p203 = por %p201, %p202
      %p204 = scmp.ne.s32.totalorder %s195, %s196
      %p205 = scmp.eq.s32.totalorder %s26, 0
      %p206 = por %p204, %p205
      %p207 = scmp.ne.s32.totalorder %s195, %s196
      %p208 = scmp.eq.s32.totalorder %s27, 1
      %p209 = por %p207, %p208
      %p211 = scmp.ne.s32.totalorder %s196, %s210
      %p212 = scmp.eq.s32.totalorder %s27, 0
      %p213 = por %p211, %p212
      %s215 = sadd.s32 %s214, 1
      %p218 = scmp.eq.s32.totalorder %s21, 1
      %p219 = scmp.ne.s32.totalorder %s214, %s216
      %p220 = scmp.eq.s32.totalorder %s21, 0
      %p221 = por %p219, %p220
      %p222 = scmp.ne.s32.totalorder %s214, %s216
      %p223 = scmp.eq.s32.totalorder %s26, 1
      %p224 = por %p222, %p223
      %p225 = scmp.ne.s32.totalorder %s216, %s217
      %p226 = scmp.eq.s32.totalorder %s26, 0
      %p227 = por %p225, %p226
      %p228 = scmp.ne.s32.totalorder %s216, %s217
      %p229 = scmp.eq.s32.totalorder %s27, 1
      %p230 = por %p228, %p229
      %p232 = scmp.ne.s32.totalorder %s217, %s231
      %p233 = scmp.eq.s32.totalorder %s27, 0
      %p234 = por %p232, %p233
      %s235 = ssub.s32 %s28, %s40
      %s236 = ssub.s32 %s29, %s36
      %s237 = sor.u32 %s235, %s236
      %p238 = scmp.eq.s32.totalorder %s237, 0
      %s240 = sadd.s32 %s239, 1
      %s241 = scalar_select %p238, %s239, %s240
      %p244 = pneg %p238
      %p245 = scmp.eq.s32.totalorder %s21, 1
      %p246 = por %p244, %p245
      %p247 = scmp.ne.s32.totalorder %s239, %s242
      %p248 = scmp.eq.s32.totalorder %s21, 0
      %p249 = por %p247, %p248
      %p250 = scmp.ne.s32.totalorder %s239, %s242
      %p251 = scmp.eq.s32.totalorder %s26, 1
      %p252 = por %p250, %p251
      %p253 = scmp.ne.s32.totalorder %s242, %s243
      %p254 = scmp.eq.s32.totalorder %s26, 0
      %p255 = por %p253, %p254
      %p256 = scmp.ne.s32.totalorder %s242, %s243
      %p257 = scmp.eq.s32.totalorder %s27, 1
      %p258 = por %p256, %p257
      %p260 = scmp.ne.s32.totalorder %s243, %s259
      %p261 = scmp.eq.s32.totalorder %s27, 0
      %p262 = por %p260, %p261
      %p263 = scmp.le.s32.totalorder 1, %s21
      %p264 = scmp.lt.s32.totalorder %s21, 3
      %p265 = pnand %p263, %p264
      %p266 = pneg %p265
      // Predicated region
      $region9: #{tpu_custom_call.1} parent=5 // pred_check
        _
      $region10: #{tpu_custom_call.1} parent=5 // pred_check_branch
        %268 = sbr.rel (%p265) target = $region12
      $region11: #{tpu_custom_call.1} parent=5 // pred_region
        %s269 = ssub.s32 %s21, 1
        // Predicated region
        $region13: #{tpu_custom_call.1} parent=11 // pred_check
          %p270 = pneg %p59
        $region14: #{tpu_custom_call.1} parent=11 // pred_check_branch
          %272 = sbr.rel (%p270) target = $region16
        $region15: #{tpu_custom_call.1} parent=11 // pred_region
          %274 = vsyncadd [#allocation6], 0
          %s275 = smul.addr %s30, 4
          %s276 = scalar_lea.hbm %s0, %s275
          %s278 = sshll.u32 %s276, 4
          %s279 = int_to_ptr.hbm [resolvable:$true] %s278
          %s280 = sshll.u32 [#allocation5], 4
          %s281 = int_to_ptr.vmem [resolvable:$true] %s280
          %283 = dma.hbm_to_vmem [thread:$0]  %s279, 64, %s281, [#allocation6]
        $region16: #{tpu_custom_call.1} parent=11 // pred_fallthru
          _
        // Predicated region
        $region17: #{tpu_custom_call.1} parent=11 // pred_check
          %p284 = pneg %p80
        $region18: #{tpu_custom_call.1} parent=11 // pred_check_branch
          %286 = sbr.rel (%p284) target = $region20
        $region19: #{tpu_custom_call.1} parent=11 // pred_region
          %288 = vsyncadd [#allocation9], 0
          %s289 = sshll.u32 %s1, 4
          %s290 = int_to_ptr.hbm [resolvable:$true] %s289
          %s291 = sshll.u32 [#allocation8], 4
          %s292 = int_to_ptr.vmem [resolvable:$true] %s291
          %297 = dma.hbm_to_vmem [thread:$0]  %s290, 256, %s292, [#allocation9], 64, 64, 4
        $region20: #{tpu_custom_call.1} parent=11 // pred_fallthru
          _
        // Predicated region
        $region21: #{tpu_custom_call.1} parent=11 // pred_check
          %p298 = pneg %p101
        $region22: #{tpu_custom_call.1} parent=11 // pred_check_branch
          %300 = sbr.rel (%p298) target = $region24
        $region23: #{tpu_custom_call.1} parent=11 // pred_region
          _
        $region24: #{tpu_custom_call.1} parent=11 // pred_fallthru
          _
        // Predicated region
        $region25: #{tpu_custom_call.1} parent=11 // pred_check
          %p301 = pneg %p122
        $region26: #{tpu_custom_call.1} parent=11 // pred_check_branch
          %303 = sbr.rel (%p301) target = $region28
        $region27: #{tpu_custom_call.1} parent=11 // pred_region
          %305 = vsyncadd [#allocation9], 0
          %s306 = sshll.u32 %s3, 4
          %s307 = int_to_ptr.hbm [resolvable:$true] %s306
          %s308 = sshll.u32 [#allocation10], 4
          %s309 = int_to_ptr.vmem [resolvable:$true] %s308
          %314 = dma.hbm_to_vmem [thread:$0]  %s307, 256, %s309, [#allocation9], 64, 64, 4
        $region28: #{tpu_custom_call.1} parent=11 // pred_fallthru
          _
        // Predicated region
        $region29: #{tpu_custom_call.1} parent=11 // pred_check
          %p315 = pneg %p143
        $region30: #{tpu_custom_call.1} parent=11 // pred_check_branch
          %317 = sbr.rel (%p315) target = $region32
        $region31: #{tpu_custom_call.1} parent=11 // pred_region
          _
        $region32: #{tpu_custom_call.1} parent=11 // pred_fallthru
          _
        // Predicated region
        $region33: #{tpu_custom_call.1} parent=11 // pred_check
          %p318 = pneg %p164
        $region34: #{tpu_custom_call.1} parent=11 // pred_check_branch
          %320 = sbr.rel (%p318) target = $region36
        $region35: #{tpu_custom_call.1} parent=11 // pred_region
          %322 = vsyncadd [#allocation12], 0
          %s323 = sshll.u32 %s5, 4
          %s324 = int_to_ptr.hbm [resolvable:$true] %s323
          %s325 = sshll.u32 [#allocation11], 4
          %s326 = int_to_ptr.vmem [resolvable:$true] %s325
          %331 = dma.hbm_to_vmem [thread:$0]  %s324, 256, %s326, [#allocation12], 64, 64, 4
        $region36: #{tpu_custom_call.1} parent=11 // pred_fallthru
          _
        // Predicated region
        $region37: #{tpu_custom_call.1} parent=11 // pred_check
          %p332 = pneg %p185
        $region38: #{tpu_custom_call.1} parent=11 // pred_check_branch
          %334 = sbr.rel (%p332) target = $region40
        $region39: #{tpu_custom_call.1} parent=11 // pred_region
          _
        $region40: #{tpu_custom_call.1} parent=11 // pred_fallthru
          _
        // Predicated region
        $region41: #{tpu_custom_call.1} parent=11 // pred_check
          %p335 = pneg %p206
        $region42: #{tpu_custom_call.1} parent=11 // pred_check_branch
          %337 = sbr.rel (%p335) target = $region44
        $region43: #{tpu_custom_call.1} parent=11 // pred_region
          %339 = vsyncadd [#allocation12], 0
          %s340 = sshll.u32 %s7, 4
          %s341 = int_to_ptr.hbm [resolvable:$true] %s340
          %s342 = sshll.u32 [#allocation13], 4
          %s343 = int_to_ptr.vmem [resolvable:$true] %s342
          %348 = dma.hbm_to_vmem [thread:$0]  %s341, 256, %s343, [#allocation12], 64, 64, 4
        $region44: #{tpu_custom_call.1} parent=11 // pred_fallthru
          _
        // Predicated region
        $region45: #{tpu_custom_call.1} parent=11 // pred_check
          %p349 = pneg %p227
        $region46: #{tpu_custom_call.1} parent=11 // pred_check_branch
          %351 = sbr.rel (%p349) target = $region48
        $region47: #{tpu_custom_call.1} parent=11 // pred_region
          _
        $region48: #{tpu_custom_call.1} parent=11 // pred_fallthru
          _
      $region12: #{tpu_custom_call.1} parent=5 // pred_fallthru
        _
      %p352 = scmp.lt.s32.totalorder %s21, 2
      // Predicated region
      $region49: #{tpu_custom_call.1} parent=5 // pred_check
        %p353 = pneg %p352
      $region50: #{tpu_custom_call.1} parent=5 // pred_check_branch
        %355 = sbr.rel (%p353) target = $region52
      $region51: #{tpu_custom_call.1} parent=5 // pred_region
        _
      $region52: #{tpu_custom_call.1} parent=5 // pred_fallthru
        _
      %p356 = scmp.le.s32.totalorder 1, %s21
      %p357 = scmp.lt.s32.totalorder %s21, 3
      %p358 = pnand %p356, %p357
      %p359 = pneg %p358
      // Predicated region
      $region53: #{tpu_custom_call.1} parent=5 // pred_check
        _
      $region54: #{tpu_custom_call.1} parent=5 // pred_check_branch
        %361 = sbr.rel (%p358) target = $region56
      $region55: #{tpu_custom_call.1} parent=5 // pred_region
        %s362 = ssub.s32 %s21, 1
        // Predicated region
        $region57: #{tpu_custom_call.1} parent=55 // pred_check
          %p363 = pneg %p59
        $region58: #{tpu_custom_call.1} parent=55 // pred_check_branch
          %365 = sbr.rel (%p363) target = $region60
        $region59: #{tpu_custom_call.1} parent=55 // pred_region
          %367 = dma.done [#allocation6], 64
        $region60: #{tpu_custom_call.1} parent=55 // pred_fallthru
          _
        // Predicated region
        $region61: #{tpu_custom_call.1} parent=55 // pred_check
          %p368 = pneg %p80
        $region62: #{tpu_custom_call.1} parent=55 // pred_check_branch
          %370 = sbr.rel (%p368) target = $region64
        $region63: #{tpu_custom_call.1} parent=55 // pred_region
          %372 = dma.done [#allocation9], 256
        $region64: #{tpu_custom_call.1} parent=55 // pred_fallthru
          _
        // Predicated region
        $region65: #{tpu_custom_call.1} parent=55 // pred_check
          %p373 = pneg %p122
        $region66: #{tpu_custom_call.1} parent=55 // pred_check_branch
          %375 = sbr.rel (%p373) target = $region68
        $region67: #{tpu_custom_call.1} parent=55 // pred_region
          %377 = dma.done [#allocation9], 256
        $region68: #{tpu_custom_call.1} parent=55 // pred_fallthru
          _
        // Predicated region
        $region69: #{tpu_custom_call.1} parent=55 // pred_check
          %p378 = pneg %p164
        $region70: #{tpu_custom_call.1} parent=55 // pred_check_branch
          %380 = sbr.rel (%p378) target = $region72
        $region71: #{tpu_custom_call.1} parent=55 // pred_region
          %382 = dma.done [#allocation12], 256
        $region72: #{tpu_custom_call.1} parent=55 // pred_fallthru
          _
        // Predicated region
        $region73: #{tpu_custom_call.1} parent=55 // pred_check
          %p383 = pneg %p206
        $region74: #{tpu_custom_call.1} parent=55 // pred_check_branch
          %385 = sbr.rel (%p383) target = $region76
        $region75: #{tpu_custom_call.1} parent=55 // pred_region
          %387 = dma.done [#allocation12], 256
        $region76: #{tpu_custom_call.1} parent=55 // pred_fallthru
          _
        %p388 = pneg %p59
        %p389 = pneg %p56
        %p390 = pneg %p80
        %p391 = pneg %p77
        %p392 = pneg %p101
        %p393 = pneg %p98
        %p394 = pneg %p122
        %p395 = pneg %p119
        %p396 = pneg %p143
        %p397 = pneg %p140
        %p398 = pneg %p164
        %p399 = pneg %p161
        %p400 = pneg %p185
        %p401 = pneg %p182
        %p402 = pneg %p206
        %p403 = pneg %p203
        %p404 = pneg %p227
        %p405 = pneg %p224
        %p406 = pneg %p255
        %p407 = pneg %p252
        %s408 = sand.u32 %s242, 1
        %s409 = scalar_lea.sflag [#allocation7], %s408
        %s410 = sand.u32 %s242, 1
        %s411 = smul.addr %s410, 8
        %s412 = scalar_lea.vmem [#allocation14], %s411
        %p414 = scmp.eq.s32.totalorder %s31, 0
        // Predicated region
        $region77: #{tpu_custom_call.1} parent=55 // pred_check
          %p415 = pneg %p414
        $region78: #{tpu_custom_call.1} parent=55 // pred_check_branch
          %417 = sbr.rel (%p415) target = $region80
        $region79: #{tpu_custom_call.1} parent=55 // pred_region
          %v418 = vld [vmem:[#allocation5] sm:$0xf]
          %v419 = vld [vmem:[#allocation10] sm:$0xf]
          %v420 = vld [vmem:[#allocation10 + $0x4] sm:$0xf]
          %v421 = vld [vmem:[#allocation10 + $0x8] sm:$0xf]
          %v422 = vld [vmem:[#allocation10 + $0xc] sm:$0xf]
          %v423 = vld [vmem:[%s4] sm:$0x1]
          %v425 = vperm.slane %v423, 0
          %v431 = vunpack.c.l.b16 %v419
          %v432 = vunpack.c.l.b16 %v420
          %v433 = vunpack.c.l.b16 %v421
          %v434 = vunpack.c.l.b16 %v422
          %v435 = vpack.c.b16 %v432, %v431
          %v436 = vpack.c.b16 %v434, %v433
          %vm439 = vcmask 261120
          %v441 = vsel %vm439, %v418, 0
          %443 = vmatpush.bf16.msra.mxu0 0
          %444 = vmatpush.bf16.msra.mxu0 0
          %445 = vmatpush.bf16.msra.mxu0 0
          %446 = vmatpush.bf16.msra.mxu0 0
          %447 = vmatpush.bf16.msra.mxu0 0
          %448 = vmatpush.bf16.msra.mxu0 0
          %449 = vmatpush.bf16.msra.mxu0 %v436
          %450 = vmatpush.bf16.msra.mxu0 %v435
          %451 = vmatmul.bf16.gmra.mxu0 %v441
          %v452 = vpop.f32.mrf.mxu0
          %v453 = vadd.f32 %v425, %v452
          %v454 = vpop.f32.mrf.mxu0
          %455 = vdwg.mxu0
          %v456 = vpack.c.bf16 %v453, %v453
          %vm457 = vcmask 257024
          %458 = vst.msk [vmem:[#allocation2] sm:$0xf] %vm457, %v456
          %v459 = vld [vmem:[#allocation11] sm:$0xf]
          %v460 = vld [vmem:[#allocation11 + $0x4] sm:$0xf]
          %v461 = vld [vmem:[#allocation11 + $0x8] sm:$0xf]
          %v462 = vld [vmem:[#allocation11 + $0xc] sm:$0xf]
          %v463 = vld [vmem:[%s6] sm:$0x1]
          %v465 = vperm.slane %v463, 0
          %v471 = vunpack.c.l.b16 %v459
          %v472 = vunpack.c.l.b16 %v460
          %v473 = vunpack.c.l.b16 %v461
          %v474 = vunpack.c.l.b16 %v462
          %v475 = vpack.c.b16 %v472, %v471
          %v476 = vpack.c.b16 %v474, %v473
          %479 = vmatpush.bf16.msra.mxu0 0
          %480 = vmatpush.bf16.msra.mxu0 0
          %481 = vmatpush.bf16.msra.mxu0 0
          %482 = vmatpush.bf16.msra.mxu0 0
          %483 = vmatpush.bf16.msra.mxu0 0
          %484 = vmatpush.bf16.msra.mxu0 0
          %485 = vmatpush.bf16.msra.mxu0 %v476
          %486 = vmatpush.bf16.msra.mxu0 %v475
          %487 = vmatmul.bf16.gmra.mxu0 %v441
          %v488 = vpop.f32.mrf.mxu0
          %v489 = vadd.f32 %v465, %v488
          %v490 = vpop.f32.mrf.mxu0
          %491 = vdwg.mxu0
          %v492 = vpack.c.bf16 %v489, %v489
          %493 = vst.msk [vmem:[#allocation3] sm:$0xf] %vm457, %v492
        $region80: #{tpu_custom_call.1} parent=55 // pred_fallthru
          _
        %s494 = smul.u32 %s31, 8
        %s495 = sshra.s32 %s494, 3
        %s496 = sand.u32 %s494, 7
        %s497 = smul.addr %s495, 4
        %s498 = scalar_lea.vmem [#allocation5], %s497
        %v499 = vld [vmem:[%s498] sm:$0xf]
        %v500 = vld [vmem:[#allocation8] sm:$0xf]
        %v501 = vld [vmem:[#allocation8 + $0x4] sm:$0xf]
        %v502 = vld [vmem:[#allocation8 + $0x8] sm:$0xf]
        %v503 = vld [vmem:[#allocation8 + $0xc] sm:$0xf]
        %v504 = vld [vmem:[%s2] sm:$0x1]
        %v506 = vperm.slane %v504, 0
        %v512 = vunpack.c.l.b16 %v500
        %v513 = vunpack.c.l.b16 %v501
        %v514 = vunpack.c.l.b16 %v502
        %v515 = vunpack.c.l.b16 %v503
        %v516 = vpack.c.b16 %v513, %v512
        %v517 = vpack.c.b16 %v515, %v514
        %vm520 = vcmask 261120
        %v522 = vsel %vm520, %v499, 0
        %524 = vmatpush.bf16.msra.mxu0 0
        %525 = vmatpush.bf16.msra.mxu0 0
        %526 = vmatpush.bf16.msra.mxu0 0
        %527 = vmatpush.bf16.msra.mxu0 0
        %528 = vmatpush.bf16.msra.mxu0 0
        %529 = vmatpush.bf16.msra.mxu0 0
        %530 = vmatpush.bf16.msra.mxu0 %v517
        %531 = vmatpush.bf16.msra.mxu0 %v516
        %532 = vmatmul.bf16.gmra.mxu0 %v522
        %v533 = vpop.f32.mrf.mxu0
        %v534 = vadd.f32 %v506, %v533
        %v535 = vpop.f32.mrf.mxu0
        %536 = vdwg.mxu0
        %v537 = vmul.f32 %v534, 0.17677669
        %v538 = vpack.c.bf16 %v537, %v537
        %v539 = vld [vmem:[#allocation2] sm:$0xf]
        %v540 = vld [vmem:[#allocation3] sm:$0xf]
        %vm541 = vcmask 64512
        %v543 = vsel %vm541, %v538, 0
        %v546 = vsel %vm541, %v539, 0
        %548 = vmatpush.bf16.xpose.msra.mxu0 0
        %549 = vmatpush.bf16.xpose.msra.mxu0 0
        %550 = vmatpush.bf16.xpose.msra.mxu0 0
        %551 = vmatpush.bf16.xpose.msra.mxu0 0
        %552 = vmatpush.bf16.xpose.msra.mxu0 0
        %553 = vmatpush.bf16.xpose.msra.mxu0 0
        %554 = vmatpush.bf16.xpose.msra.mxu0 0
        %555 = vmatpush.bf16.xpose.msra.mxu0 %v546
        %556 = vmatmul.bf16.gmra.mxu0 %v543
        %v557 = vpop.f32.mrf.mxu0
        %v558 = vadd.f32 0.0, %v557
        %v559 = vpop.f32.mrf.mxu0
        %560 = vdwg.mxu0
        %v561 = vsel %vm541, %v558, -inf
        %562 = vmax.xlane.f32.xlu0 %v561
        %v563 = vpop.xlane.xlu0 %562
        %v564 = vsub.f32 %v558, %v563
        %v565 = vmul.f32 %v564, 1.442695
        %v566 = vpow.pop %v565
        %v567 = vsel %vm541, %v566, 0.0
        %568 = vadd.xlane.f32.xlu0 %v567
        %v569 = vpop.xlane.xlu0 %568
        %v570 = vrcp.pop %v569
        %v571 = vmul.f32 %v566, %v570
        %v572 = vpack.c.bf16 %v571, %v571
        %v574 = vsel %vm541, %v572, 0
        %vm576 = vcmask 1043456
        %v578 = vsel %vm576, %v540, 0
        %580 = vmatpush.bf16.msra.mxu0 0
        %581 = vmatpush.bf16.msra.mxu0 0
        %582 = vmatpush.bf16.msra.mxu0 0
        %583 = vmatpush.bf16.msra.mxu0 0
        %584 = vmatpush.bf16.msra.mxu0 0
        %585 = vmatpush.bf16.msra.mxu0 0
        %586 = vmatpush.bf16.msra.mxu0 0
        %587 = vmatpush.bf16.msra.mxu0 %v578
        %588 = vmatmul.bf16.gmra.mxu0 %v574
        %v589 = vpop.f32.mrf.mxu0
        %v590 = vadd.f32 0.0, %v589
        %v591 = vpop.f32.mrf.mxu0
        %592 = vdwg.mxu0
        %v593 = vpack.c.bf16 %v590, %v590
        %vm594 = vcmask 60416
        %595 = vst.msk [vmem:[#allocation4] sm:$0xf] %vm594, %v593
        %v596 = vld [vmem:[#allocation2] sm:$0xf]
        %v597 = vld [vmem:[#allocation3] sm:$0xf]
        %v599 = vunpack.c.l.b16 %v538
        %v600 = vpack.c.b16 %v599, %v599
        %601 = vrot.lane.b32.xlu0 %v600, 120
        %v602 = vpop.permute.xlu0 %601
        %v604 = vunpack.c.l.b16 %v596
        %v605 = vpack.c.b16 %v604, %v604
        %606 = vrot.lane.b32.xlu0 %v605, 120
        %v607 = vpop.permute.xlu0 %606
        %v609 = vsel %vm541, %v602, 0
        %v612 = vsel %vm541, %v607, 0
        %614 = vmatpush.bf16.xpose.msra.mxu0 0
        %615 = vmatpush.bf16.xpose.msra.mxu0 0
        %616 = vmatpush.bf16.xpose.msra.mxu0 0
        %617 = vmatpush.bf16.xpose.msra.mxu0 0
        %618 = vmatpush.bf16.xpose.msra.mxu0 0
        %619 = vmatpush.bf16.xpose.msra.mxu0 0
        %620 = vmatpush.bf16.xpose.msra.mxu0 0
        %621 = vmatpush.bf16.xpose.msra.mxu0 %v612
        %622 = vmatmul.bf16.gmra.mxu0 %v609
        %v623 = vpop.f32.mrf.mxu0
        %v624 = vadd.f32 0.0, %v623
        %v625 = vpop.f32.mrf.mxu0
        %626 = vdwg.mxu0
        %v627 = vsel %vm541, %v624, -inf
        %628 = vmax.xlane.f32.xlu0 %v627
        %v629 = vpop.xlane.xlu0 %628
        %v630 = vsub.f32 %v624, %v629
        %v631 = vmul.f32 %v630, 1.442695
        %v632 = vpow.pop %v631
        %v633 = vsel %vm541, %v632, 0.0
        %634 = vadd.xlane.f32.xlu0 %v633
        %v635 = vpop.xlane.xlu0 %634
        %v636 = vrcp.pop %v635
        %v637 = vmul.f32 %v632, %v636
        %v638 = vpack.c.bf16 %v637, %v637
        %v640 = vunpack.c.l.b16 %v597
        %v641 = vpack.c.b16 %v640, %v640
        %642 = vrot.lane.b32.xlu0 %v641, 120
        %v643 = vpop.permute.xlu0 %642
        %v645 = vsel %vm541, %v638, 0
        %v648 = vsel %vm576, %v643, 0
        %650 = vmatpush.bf16.msra.mxu0 0
        %651 = vmatpush.bf16.msra.mxu0 0
        %652 = vmatpush.bf16.msra.mxu0 0
        %653 = vmatpush.bf16.msra.mxu0 0
        %654 = vmatpush.bf16.msra.mxu0 0
        %655 = vmatpush.bf16.msra.mxu0 0
        %656 = vmatpush.bf16.msra.mxu0 0
        %657 = vmatpush.bf16.msra.mxu0 %v648
        %658 = vmatmul.bf16.gmra.mxu0 %v645
        %v659 = vpop.f32.mrf.mxu0
        %v660 = vadd.f32 0.0, %v659
        %v661 = vpop.f32.mrf.mxu0
        %662 = vdwg.mxu0
        %v663 = vpack.c.bf16 %v660, %v660
        %665 = vrot.lane.b32.xlu0 %v663, 8
        %v666 = vpop.permute.xlu0 %665
        %vm668 = vcmask 126016
        %669 = vst.msk [vmem:[#allocation4] sm:$0xf] %vm668, %v666
        %v670 = vld [vmem:[#allocation2] sm:$0xf]
        %v671 = vld [vmem:[#allocation3] sm:$0xf]
        %672 = vrot.lane.b32.xlu0 %v600, 112
        %v673 = vpop.permute.xlu0 %672
        %v675 = vunpack.c.l.b16 %v670
        %v676 = vpack.c.b16 %v675, %v675
        %677 = vrot.lane.b32.xlu0 %v676, 112
        %v678 = vpop.permute.xlu0 %677
        %v680 = vsel %vm541, %v673, 0
        %v683 = vsel %vm541, %v678, 0
        %685 = vmatpush.bf16.xpose.msra.mxu0 0
        %686 = vmatpush.bf16.xpose.msra.mxu0 0
        %687 = vmatpush.bf16.xpose.msra.mxu0 0
        %688 = vmatpush.bf16.xpose.msra.mxu0 0
        %689 = vmatpush.bf16.xpose.msra.mxu0 0
        %690 = vmatpush.bf16.xpose.msra.mxu0 0
        %691 = vmatpush.bf16.xpose.msra.mxu0 0
        %692 = vmatpush.bf16.xpose.msra.mxu0 %v683
        %693 = vmatmul.bf16.gmra.mxu0 %v680
        %v694 = vpop.f32.mrf.mxu0
        %v695 = vadd.f32 0.0, %v694
        %v696 = vpop.f32.mrf.mxu0
        %697 = vdwg.mxu0
        %v698 = vsel %vm541, %v695, -inf
        %699 = vmax.xlane.f32.xlu0 %v698
        %v700 = vpop.xlane.xlu0 %699
        %v701 = vsub.f32 %v695, %v700
        %v702 = vmul.f32 %v701, 1.442695
        %v703 = vpow.pop %v702
        %v704 = vsel %vm541, %v703, 0.0
        %705 = vadd.xlane.f32.xlu0 %v704
        %v706 = vpop.xlane.xlu0 %705
        %v707 = vrcp.pop %v706
        %v708 = vmul.f32 %v703, %v707
        %v709 = vpack.c.bf16 %v708, %v708
        %v711 = vunpack.c.l.b16 %v671
        %v712 = vpack.c.b16 %v711, %v711
        %713 = vrot.lane.b32.xlu0 %v712, 112
        %v714 = vpop.permute.xlu0 %713
        %v716 = vsel %vm541, %v709, 0
        %v719 = vsel %vm576, %v714, 0
        %721 = vmatpush.bf16.msra.mxu0 0
        %722 = vmatpush.bf16.msra.mxu0 0
        %723 = vmatpush.bf16.msra.mxu0 0
        %724 = vmatpush.bf16.msra.mxu0 0
        %725 = vmatpush.bf16.msra.mxu0 0
        %726 = vmatpush.bf16.msra.mxu0 0
        %727 = vmatpush.bf16.msra.mxu0 0
        %728 = vmatpush.bf16.msra.mxu0 %v719
        %729 = vmatmul.bf16.gmra.mxu0 %v716
        %v730 = vpop.f32.mrf.mxu0
        %v731 = vadd.f32 0.0, %v730
        %v732 = vpop.f32.mrf.mxu0
        %733 = vdwg.mxu0
        %v734 = vpack.c.bf16 %v731, %v731
        %736 = vrot.lane.b32.xlu0 %v734, 16
        %v737 = vpop.permute.xlu0 %736
        %vm739 = vcmask 191616
        %740 = vst.msk [vmem:[#allocation4] sm:$0xf] %vm739, %v737
        %v741 = vld [vmem:[#allocation2] sm:$0xf]
        %v742 = vld [vmem:[#allocation3] sm:$0xf]
        %743 = vrot.lane.b32.xlu0 %v600, 104
        %v744 = vpop.permute.xlu0 %743
        %v746 = vunpack.c.l.b16 %v741
        %v747 = vpack.c.b16 %v746, %v746
        %748 = vrot.lane.b32.xlu0 %v747, 104
        %v749 = vpop.permute.xlu0 %748
        %v751 = vsel %vm541, %v744, 0
        %v754 = vsel %vm541, %v749, 0
        %756 = vmatpush.bf16.xpose.msra.mxu0 0
        %757 = vmatpush.bf16.xpose.msra.mxu0 0
        %758 = vmatpush.bf16.xpose.msra.mxu0 0
        %759 = vmatpush.bf16.xpose.msra.mxu0 0
        %760 = vmatpush.bf16.xpose.msra.mxu0 0
        %761 = vmatpush.bf16.xpose.msra.mxu0 0
        %762 = vmatpush.bf16.xpose.msra.mxu0 0
        %763 = vmatpush.bf16.xpose.msra.mxu0 %v754
        %764 = vmatmul.bf16.gmra.mxu0 %v751
        %v765 = vpop.f32.mrf.mxu0
        %v766 = vadd.f32 0.0, %v765
        %v767 = vpop.f32.mrf.mxu0
        %768 = vdwg.mxu0
        %v769 = vsel %vm541, %v766, -inf
        %770 = vmax.xlane.f32.xlu0 %v769
        %v771 = vpop.xlane.xlu0 %770
        %v772 = vsub.f32 %v766, %v771
        %v773 = vmul.f32 %v772, 1.442695
        %v774 = vpow.pop %v773
        %v775 = vsel %vm541, %v774, 0.0
        %776 = vadd.xlane.f32.xlu0 %v775
        %v777 = vpop.xlane.xlu0 %776
        %v778 = vrcp.pop %v777
        %v779 = vmul.f32 %v774, %v778
        %v780 = vpack.c.bf16 %v779, %v779
        %v782 = vunpack.c.l.b16 %v742
        %v783 = vpack.c.b16 %v782, %v782
        %784 = vrot.lane.b32.xlu0 %v783, 104
        %v785 = vpop.permute.xlu0 %784
        %v787 = vsel %vm541, %v780, 0
        %v790 = vsel %vm576, %v785, 0
        %792 = vmatpush.bf16.msra.mxu0 0
        %793 = vmatpush.bf16.msra.mxu0 0
        %794 = vmatpush.bf16.msra.mxu0 0
        %795 = vmatpush.bf16.msra.mxu0 0
        %796 = vmatpush.bf16.msra.mxu0 0
        %797 = vmatpush.bf16.msra.mxu0 0
        %798 = vmatpush.bf16.msra.mxu0 0
        %799 = vmatpush.bf16.msra.mxu0 %v790
        %800 = vmatmul.bf16.gmra.mxu0 %v787
        %v801 = vpop.f32.mrf.mxu0
        %v802 = vadd.f32 0.0, %v801
        %v803 = vpop.f32.mrf.mxu0
        %804 = vdwg.mxu0
        %v805 = vpack.c.bf16 %v802, %v802
        %807 = vrot.lane.b32.xlu0 %v805, 24
        %v808 = vpop.permute.xlu0 %807
        %vm810 = vcmask 257216
        %811 = vst.msk [vmem:[#allocation4] sm:$0xf] %vm810, %v808
        %v812 = vld [vmem:[#allocation4] sm:$0xf]
        %v813 = vld [vmem:[#allocation13] sm:$0xf]
        %v814 = vld [vmem:[#allocation13 + $0x4] sm:$0xf]
        %v815 = vld [vmem:[#allocation13 + $0x8] sm:$0xf]
        %v816 = vld [vmem:[#allocation13 + $0xc] sm:$0xf]
        %v817 = vld [vmem:[%s8] sm:$0x1]
        %v819 = vperm.slane %v817, 0
        %v825 = vunpack.c.l.b16 %v813
        %v826 = vunpack.c.l.b16 %v814
        %v827 = vunpack.c.l.b16 %v815
        %v828 = vunpack.c.l.b16 %v816
        %v829 = vpack.c.b16 %v826, %v825
        %v830 = vpack.c.b16 %v828, %v827
        %v834 = vsel %vm520, %v812, 0
        %836 = vmatpush.bf16.msra.mxu0 0
        %837 = vmatpush.bf16.msra.mxu0 0
        %838 = vmatpush.bf16.msra.mxu0 0
        %839 = vmatpush.bf16.msra.mxu0 0
        %840 = vmatpush.bf16.msra.mxu0 0
        %841 = vmatpush.bf16.msra.mxu0 0
        %842 = vmatpush.bf16.msra.mxu0 %v830
        %843 = vmatpush.bf16.msra.mxu0 %v829
        %844 = vmatmul.bf16.gmra.mxu0 %v834
        %v845 = vpop.f32.mrf.mxu0
        %v846 = vadd.f32 %v819, %v845
        %v847 = vpop.f32.mrf.mxu0
        %848 = vdwg.mxu0
        %849 = vst.msk [vmem:[%s412] sm:$0xff] %vm520, %v846
        %s850 = sand.u32 %s242, 1
        %s851 = scalar_lea.sflag [#allocation7], %s850
        %s852 = sand.u32 %s242, 1
        %s853 = smul.addr %s852, 8
        %s854 = scalar_lea.vmem [#allocation14], %s853
        // Predicated region
        $region81: #{tpu_custom_call.1} parent=55 // pred_check
          %p855 = pneg %p252
        $region82: #{tpu_custom_call.1} parent=55 // pred_check_branch
          %857 = sbr.rel (%p855) target = $region84
        $region83: #{tpu_custom_call.1} parent=55 // pred_region
          %859 = vsyncadd %s851, 0
          %s860 = sadd.s32 %s31, %s30
          %s861 = smul.addr %s860, 8
          %s862 = scalar_lea.hbm %s9, %s861
          %s864 = sshll.u32 %s854, 4
          %s865 = int_to_ptr.vmem [resolvable:$true] %s864
          %s866 = sshll.u32 %s862, 4
          %s867 = int_to_ptr.hbm [resolvable:$true] %s866
          %869 = dma.vmem_to_hbm [thread:$0]  %s865, 128, %s867, %s851
        $region84: #{tpu_custom_call.1} parent=55 // pred_fallthru
          _
      $region56: #{tpu_custom_call.1} parent=5 // pred_fallthru
        _
      %p870 = scmp.le.s32.totalorder 2, %s21
      // Predicated region
      $region85: #{tpu_custom_call.1} parent=5 // pred_check
        %p871 = pneg %p870
      $region86: #{tpu_custom_call.1} parent=5 // pred_check_branch
        %873 = sbr.rel (%p871) target = $region88
      $region87: #{tpu_custom_call.1} parent=5 // pred_region
        %s874 = ssub.s32 %s21, 2
        // Predicated region
        $region89: #{tpu_custom_call.1} parent=87 // pred_check
          %p875 = pneg %p258
        $region90: #{tpu_custom_call.1} parent=87 // pred_check_branch
          %877 = sbr.rel (%p875) target = $region92
        $region91: #{tpu_custom_call.1} parent=87 // pred_region
          %s878 = sand.u32 %s243, 1
          %s879 = scalar_lea.sflag [#allocation7], %s878
          %s880 = sand.u32 %s243, 1
          %s881 = smul.addr %s880, 8
          %s882 = scalar_lea.vmem [#allocation14], %s881
          %884 = dma.done %s879, 128
        $region92: #{tpu_custom_call.1} parent=87 // pred_fallthru
          _
      $region88: #{tpu_custom_call.1} parent=5 // pred_fallthru
        _
    $region6: #{tpu_custom_call.1} parent=1 // loop_footer
      %s25 = sadd.s32 1, %s21
    $region7: #{tpu_custom_call.1} parent=1 // loop_footer_branch
      %20 = sbr.rel target = $region3
    $region8: #{tpu_custom_call.1} parent=1 // loop_exit
      _
    %885 = vsyncpa [#allocation6], 1
    %s886 = scalar_lea.sflag [#allocation6], 1
    %887 = vsyncpa %s886, 1
    %888 = vsyncpa [#allocation9], 1
    %889 = vsyncpa [#allocation12], 1
    %890 = vsyncpa [#allocation7], 1
    %s891 = scalar_lea.sflag [#allocation7], 1
    %892 = vsyncpa %s891, 1

</llo_original>
